<compile_context>
chip_gen: v5e
topology: v5e:2x2
jax: 0.10.0
libtpu: 0.0.40
codegen_flags: <defaults>
</compile_context>

<pallas_src>
import functools

import jax
import jax.numpy as jnp
from jax.experimental import pallas as pl
from jax.experimental.pallas import tpu as pltpu


def _user_adapter_embed_kernel(ids_ref, p_ref, wemb_hbm, uemb_ref, out_ref,
                               *scratch, S, TB, user_in_vmem, cast_user):
    """Assembles the spliced (TB, S+1, D) embedding block for one grid step.

    out[bb, 0]    <- word_emb[ids[b, 0]]
    out[bb, 1]    <- user_emb[p[b]]          (cast to out dtype)
    out[bb, s+1]  <- word_emb[ids[b, s]]     for s in [1, S)
    with b = grid_step * TB + bb.
    """
    if (not user_in_vmem) and cast_user:
        urows_vmem, sems = scratch
    else:
        urows_vmem = None
        (sems,) = scratch
    word_sem = sems.at[0]
    user_sem = sems.at[1]

    base = pl.program_id(0) * TB

    # Build every descriptor once (SMEM id reads happen here only), keep the
    # objects around so the drain below does not redo address math.
    word_copies = []
    user_copies = []
    for bb in range(TB):
        b = base + bb
        if not user_in_vmem:
            if cast_user:
                udst = urows_vmem.at[pl.ds(bb, 1), :]
            else:
                udst = out_ref.at[bb, pl.ds(1, 1), :]
            user_copies.append(pltpu.make_async_copy(
                uemb_ref.at[pl.ds(p_ref[b], 1), :], udst, user_sem))
        for s in range(S):
            dst_row = 0 if s == 0 else s + 1          # token 0 keeps row 0
            tok = ids_ref[b * S + s]                  # SMEM scalar read
            word_copies.append(pltpu.make_async_copy(
                wemb_hbm.at[pl.ds(tok, 1), :],        # (1, D) row in HBM
                out_ref.at[bb, pl.ds(dst_row, 1), :],  # (1, D) row in VMEM out
                word_sem))

    # Issue everything up-front so the row DMAs overlap each other and the
    # previous grid step's output writeback.
    for cp in user_copies:
        cp.start()
    for cp in word_copies:
        cp.start()

    if user_in_vmem:
        # Whole user table is VMEM-resident: dynamic-row read + cast + store.
        for bb in range(TB):
            b = base + bb
            urow = uemb_ref[pl.ds(p_ref[b], 1), :]
            out_ref[bb, pl.ds(1, 1), :] = urow.astype(out_ref.dtype)
    elif cast_user:
        for cp in user_copies:                         # own semaphore -> safe
            cp.wait()
        for bb in range(TB):
            out_ref[bb, pl.ds(1, 1), :] = (
                urows_vmem[pl.ds(bb, 1), :].astype(out_ref.dtype))
    else:
        for cp in user_copies:                         # landed directly in out
            cp.wait()

    # Drain all word-row DMAs (same descriptor objects, no rebuilds) before
    # the output block is written back by the pipeline.
    for cp in word_copies:
        cp.wait()


def _pick_tb(B, S, D, itemsize,
             target_block_bytes=2 * 1024 * 1024, max_row_copies=512):
    """Largest divisor of B that keeps the out block ~<=2 MiB, the per-step
    DMA-descriptor count bounded, and >= 2 grid steps (v7x has 2 TCs)."""
    rows = S + 1
    per_batch_row_bytes = rows * D * itemsize
    cap = max(1, min(target_block_bytes // max(per_batch_row_bytes, 1),
                     max_row_copies // rows,
                     B))
    best = 1
    for t in range(1, B + 1):
        if B % t != 0 or t > cap:
            continue
        if B >= 2 and B // t < 2:   # keep both TensorCores busy on v7x
            continue
        best = t
    return best


def user_adapter_forward(input_ids, attention_mask, p, word_emb, user_emb, *,
                         force_kernel=False,
                         user_table_vmem_max_bytes=512 * 1024):
    """Mirrors UserAdapter.forward up to (but not including) base_model()."""
    B, S = input_ids.shape
    V, D = word_emb.shape
    out_dtype = word_emb.dtype
    itemsize = jnp.dtype(out_dtype).itemsize
    rows = S + 1

    # Attention-mask glue, identical to the torch code path.
    if attention_mask is not None and p is not None:
        prefix = jnp.ones((B, 1), attention_mask.dtype)
        attention_mask = jnp.concatenate([prefix, attention_mask], axis=1)

    if p is None:
        # No user prompt: plain word-embedding lookup only.
        return jnp.take(word_emb, input_ids, axis=0), attention_mask

    U, Du = user_emb.shape
    assert Du == D, "usr_dim must match the word-embedding dim to concatenate"
    u_itemsize = jnp.dtype(user_emb.dtype).itemsize

    def _jax_fallback():
        we = jnp.take(word_emb, input_ids, axis=0)
        up = jnp.take(user_emb, p, axis=0)[:, None, :].astype(we.dtype)
        return jnp.concatenate([we[:, :1], up, we[:, 1:]], axis=1), attention_mask

    # Wrapper-level dispatch: the kernel only pays off when it moves real data
    # with lane-dense rows; otherwise XLA's fused gather/concat is fine.
    if D % 128 != 0:
        # TODO(synk): pad D to a multiple of 128 instead of falling back.
        return _jax_fallback()
    if not force_kernel and B * rows * D * itemsize < 256 * 1024:
        return _jax_fallback()
    if rows > 512:
        # TODO(synk): tile the sequence dim (second grid axis) for very long S.
        return _jax_fallback()

    TB = _pick_tb(B, S, D, itemsize)
    user_in_vmem = U * D * u_itemsize <= user_table_vmem_max_bytes
    cast_user = user_emb.dtype != out_dtype

    # VMEM budget: double-buffered out block + resident user table + staging.
    vmem_bytes = 2 * TB * rows * D * itemsize
    vmem_bytes += 2 * U * D * u_itemsize if user_in_vmem else 0
    vmem_bytes += TB * D * u_itemsize if ((not user_in_vmem) and cast_user) else 0
    if vmem_bytes > 24 * 1024 * 1024:
        # TODO(synk): tile the sequence dim rather than falling back.
        return _jax_fallback()

    # Clamp ids: out-of-range indices must not DMA from outside the tables
    # (no runtime bounds check on HBM/VMEM refs).  Note: torch would raise on
    # OOB ids; here they are silently clamped.
    ids_flat = jnp.clip(input_ids.reshape(-1).astype(jnp.int32), 0, V - 1)
    p_ids = jnp.clip(p.astype(jnp.int32), 0, U - 1)

    kernel = functools.partial(_user_adapter_embed_kernel, S=S, TB=TB,
                               user_in_vmem=user_in_vmem, cast_user=cast_user)

    if user_in_vmem:
        # Whole (small) user table resident in VMEM, loaded once by the pipeline.
        user_spec = pl.BlockSpec((U, D), lambda g, ids, pr: (0, 0))
        scratch = [pltpu.SemaphoreType.DMA((2,))]
    else:
        user_spec = pl.BlockSpec(memory_space=pl.ANY)
        if cast_user:
            scratch = [pltpu.VMEM((TB, D), user_emb.dtype),
                       pltpu.SemaphoreType.DMA((2,))]
        else:
            scratch = [pltpu.SemaphoreType.DMA((2,))]

    inputs_embeds = pl.pallas_call(
        kernel,
        out_shape=jax.ShapeDtypeStruct((B, rows, D), out_dtype),
        grid_spec=pltpu.PrefetchScalarGridSpec(
            num_scalar_prefetch=2,                      # ids_flat, p -> SMEM
            grid=(B // TB,),
            in_specs=[
                pl.BlockSpec(memory_space=pl.ANY),      # word table stays HBM
                user_spec,                              # user table: VMEM or HBM
            ],
            out_specs=pl.BlockSpec((TB, rows, D), lambda g, ids, pr: (g, 0, 0)),
            scratch_shapes=scratch,
        ),
        compiler_params=pltpu.CompilerParams(
            dimension_semantics=("parallel",),
            vmem_limit_bytes=32 * 1024 * 1024),
    )(ids_flat, p_ids, word_emb, user_emb)

    # TODO(synk): the wrapped `base_model(inputs_embeds=..., attention_mask=...)`
    # is an arbitrary external transformer and is not reproduced here.
    return inputs_embeds, attention_mask


def _reference_assemble(input_ids, p, word_emb, user_emb):
    we = jnp.take(word_emb, input_ids, axis=0)
    up = jnp.take(user_emb, p, axis=0)[:, None, :].astype(we.dtype)
    return jnp.concatenate([we[:, :1], up, we[:, 1:]], axis=1)


if __name__ == "__main__":
    key = jax.random.PRNGKey(0)
    B, S, D = 2, 8, 128        # batch, seq, hidden (usr_dim == hidden)
    VOCAB, USR = 64, 16        # base_model vocab size, config.usr_size

    k_ids, k_p, k_w, k_u = jax.random.split(key, 4)
    input_ids = jax.random.randint(k_ids, (B, S), 0, VOCAB, dtype=jnp.int32)
    p = jax.random.randint(k_p, (B,), 0, USR, dtype=jnp.int32)
    attention_mask = jnp.ones((B, S), jnp.float32)

    word_emb = (0.02 * jax.random.normal(k_w, (VOCAB, D))).astype(jnp.float32)
    # Torch initializes user_embedding to zeros; use nonzero weights here so
    # the user-row path is actually verified.
    user_emb = (0.05 * jax.random.normal(k_u, (USR, D))).astype(jnp.float32)

    def check(out, ref):
        assert out.shape == ref.shape
        assert jnp.allclose(out.astype(jnp.float32), ref.astype(jnp.float32),
                            atol=1e-6)

    # 1) Small user table -> VMEM-resident user-table path.
    emb1, mask1 = user_adapter_forward(input_ids, attention_mask, p,
                                       word_emb, user_emb, force_kernel=True)
    jax.block_until_ready((emb1, mask1))
    check(emb1, _reference_assemble(input_ids, p, word_emb, user_emb))
    assert mask1.shape == (B, S + 1)
    assert jnp.all(mask1[:, 0] == 1.0)

    # 2) Force the HBM user-table path (direct DMA into out, same dtype).
    emb2, _ = user_adapter_forward(input_ids, None, p, word_emb, user_emb,
                                   force_kernel=True,
                                   user_table_vmem_max_bytes=0)
    jax.block_until_ready(emb2)
    check(emb2, _reference_assemble(input_ids, p, word_emb, user_emb))

    # 3) Mixed dtypes (bf16 word table, f32 user table) -> staged cast path.
    word_bf16 = word_emb.astype(jnp.bfloat16)
    emb3, _ = user_adapter_forward(input_ids, None, p, word_bf16, user_emb,
                                   force_kernel=True,
                                   user_table_vmem_max_bytes=0)
    jax.block_until_ready(emb3)
    check(emb3, _reference_assemble(input_ids, p, word_bf16, user_emb))

    print("KERNEL_OK")
</pallas_src>

<mosaic_0001>
module attributes {stable_mosaic.version = 11 : i64} {
  func.func @_user_adapter_embed_kernel(%arg0: i32, %arg1: memref<16xi32, #tpu.memory_space<smem>>, %arg2: memref<2xi32, #tpu.memory_space<smem>>, %arg3: memref<64x128xf32, #tpu.memory_space<any>>, %arg4: memref<16x128xf32, #tpu.memory_space<vmem>>, %arg5: memref<1x9x128xf32, #tpu.memory_space<vmem>>, %arg6: memref<2x!tpu.dma_semaphore, #tpu.memory_space<semaphore_mem>>) attributes {dimension_semantics = [#tpu.dimension_semantics<parallel>], iteration_bounds = array<i64: 2>, scalar_prefetch = 2 : i64, scratch_operands = 1 : i64, tpu.core_type = #tpu.core_type<tc>, window_params = [{}, {pipeline_mode = #tpu.pipeline_mode<synchronous>, transform_indices = @transform_1, window_bounds = array<i64: 16, 128>}, {transform_indices = @transform_2, window_bounds = array<i64: 1, 9, 128>}]} {
    %c1_i32 = arith.constant 1 : i32
    %0 = arith.muli %arg0, %c1_i32 : i32
    %c0_i32 = arith.constant 0 : i32
    %1 = arith.addi %0, %c0_i32 : i32
    %c8_i32 = arith.constant 8 : i32
    %2 = arith.muli %1, %c8_i32 : i32
    %c0_i32_0 = arith.constant 0 : i32
    %3 = arith.addi %2, %c0_i32_0 : i32
    %4 = arith.index_cast %3 : i32 to index
    %5 = memref.load %arg1[%4] : memref<16xi32, #tpu.memory_space<smem>>
    %c8_i32_1 = arith.constant 8 : i32
    %6 = arith.muli %1, %c8_i32_1 : i32
    %c1_i32_2 = arith.constant 1 : i32
    %7 = arith.addi %6, %c1_i32_2 : i32
    %8 = arith.index_cast %7 : i32 to index
    %9 = memref.load %arg1[%8] : memref<16xi32, #tpu.memory_space<smem>>
    %c8_i32_3 = arith.constant 8 : i32
    %10 = arith.muli %1, %c8_i32_3 : i32
    %c2_i32 = arith.constant 2 : i32
    %11 = arith.addi %10, %c2_i32 : i32
    %12 = arith.index_cast %11 : i32 to index
    %13 = memref.load %arg1[%12] : memref<16xi32, #tpu.memory_space<smem>>
    %c8_i32_4 = arith.constant 8 : i32
    %14 = arith.muli %1, %c8_i32_4 : i32
    %c3_i32 = arith.constant 3 : i32
    %15 = arith.addi %14, %c3_i32 : i32
    %16 = arith.index_cast %15 : i32 to index
    %17 = memref.load %arg1[%16] : memref<16xi32, #tpu.memory_space<smem>>
    %c8_i32_5 = arith.constant 8 : i32
    %18 = arith.muli %1, %c8_i32_5 : i32
    %c4_i32 = arith.constant 4 : i32
    %19 = arith.addi %18, %c4_i32 : i32
    %20 = arith.index_cast %19 : i32 to index
    %21 = memref.load %arg1[%20] : memref<16xi32, #tpu.memory_space<smem>>
    %c8_i32_6 = arith.constant 8 : i32
    %22 = arith.muli %1, %c8_i32_6 : i32
    %c5_i32 = arith.constant 5 : i32
    %23 = arith.addi %22, %c5_i32 : i32
    %24 = arith.index_cast %23 : i32 to index
    %25 = memref.load %arg1[%24] : memref<16xi32, #tpu.memory_space<smem>>
    %c8_i32_7 = arith.constant 8 : i32
    %26 = arith.muli %1, %c8_i32_7 : i32
    %c6_i32 = arith.constant 6 : i32
    %27 = arith.addi %26, %c6_i32 : i32
    %28 = arith.index_cast %27 : i32 to index
    %29 = memref.load %arg1[%28] : memref<16xi32, #tpu.memory_space<smem>>
    %c8_i32_8 = arith.constant 8 : i32
    %30 = arith.muli %1, %c8_i32_8 : i32
    %c7_i32 = arith.constant 7 : i32
    %31 = arith.addi %30, %c7_i32 : i32
    %32 = arith.index_cast %31 : i32 to index
    %33 = memref.load %arg1[%32] : memref<16xi32, #tpu.memory_space<smem>>
    %c0_i32_9 = arith.constant 0 : i32
    %c0_i32_10 = arith.constant 0 : i32
    %c0_i32_11 = arith.constant 0 : i32
    %34 = tpu.memref_slice %arg3[%5, %c0_i32_11] : memref<64x128xf32, #tpu.memory_space<any>> -> memref<1x128xf32, #tpu.memory_space<any>>
    %c0_i32_12 = arith.constant 0 : i32
    %c0_i32_13 = arith.constant 0 : i32
    %35 = tpu.memref_slice %arg5[%c0_i32_9, %c0_i32_12, %c0_i32_13] : memref<1x9x128xf32, #tpu.memory_space<vmem>> -> memref<1x1x128xf32, #tpu.memory_space<vmem>>
    %36 = tpu.memref_squeeze %35 : memref<1x1x128xf32, #tpu.memory_space<vmem>> -> memref<1x128xf32, #tpu.memory_space<vmem>>
    %37 = tpu.memref_slice %arg6[%c0_i32_10] : memref<2x!tpu.dma_semaphore, #tpu.memory_space<semaphore_mem>> -> memref<1x!tpu.dma_semaphore, #tpu.memory_space<semaphore_mem>>
    %38 = tpu.memref_squeeze %37 : memref<1x!tpu.dma_semaphore, #tpu.memory_space<semaphore_mem>> -> memref<!tpu.dma_semaphore, #tpu.memory_space<semaphore_mem>>
    tpu.enqueue_dma source(%34 : memref<1x128xf32, #tpu.memory_space<any>>) target(%36 : memref<1x128xf32, #tpu.memory_space<vmem>>) target_semaphore(%38 : memref<!tpu.dma_semaphore, #tpu.memory_space<semaphore_mem>>)
    %c0_i32_14 = arith.constant 0 : i32
    %c0_i32_15 = arith.constant 0 : i32
    %c0_i32_16 = arith.constant 0 : i32
    %39 = tpu.memref_slice %arg3[%9, %c0_i32_16] : memref<64x128xf32, #tpu.memory_space<any>> -> memref<1x128xf32, #tpu.memory_space<any>>
    %c2_i32_17 = arith.constant 2 : i32
    %c0_i32_18 = arith.constant 0 : i32
    %40 = tpu.memref_slice %arg5[%c0_i32_14, %c2_i32_17, %c0_i32_18] : memref<1x9x128xf32, #tpu.memory_space<vmem>> -> memref<1x1x128xf32, #tpu.memory_space<vmem>>
    %41 = tpu.memref_squeeze %40 : memref<1x1x128xf32, #tpu.memory_space<vmem>> -> memref<1x128xf32, #tpu.memory_space<vmem>>
    %42 = tpu.memref_slice %arg6[%c0_i32_15] : memref<2x!tpu.dma_semaphore, #tpu.memory_space<semaphore_mem>> -> memref<1x!tpu.dma_semaphore, #tpu.memory_space<semaphore_mem>>
    %43 = tpu.memref_squeeze %42 : memref<1x!tpu.dma_semaphore, #tpu.memory_space<semaphore_mem>> -> memref<!tpu.dma_semaphore, #tpu.memory_space<semaphore_mem>>
    tpu.enqueue_dma source(%39 : memref<1x128xf32, #tpu.memory_space<any>>) target(%41 : memref<1x128xf32, #tpu.memory_space<vmem>>) target_semaphore(%43 : memref<!tpu.dma_semaphore, #tpu.memory_space<semaphore_mem>>)
    %c0_i32_19 = arith.constant 0 : i32
    %c0_i32_20 = arith.constant 0 : i32
    %c0_i32_21 = arith.constant 0 : i32
    %44 = tpu.memref_slice %arg3[%13, %c0_i32_21] : memref<64x128xf32, #tpu.memory_space<any>> -> memref<1x128xf32, #tpu.memory_space<any>>
    %c3_i32_22 = arith.constant 3 : i32
    %c0_i32_23 = arith.constant 0 : i32
    %45 = tpu.memref_slice %arg5[%c0_i32_19, %c3_i32_22, %c0_i32_23] : memref<1x9x128xf32, #tpu.memory_space<vmem>> -> memref<1x1x128xf32, #tpu.memory_space<vmem>>
    %46 = tpu.memref_squeeze %45 : memref<1x1x128xf32, #tpu.memory_space<vmem>> -> memref<1x128xf32, #tpu.memory_space<vmem>>
    %47 = tpu.memref_slice %arg6[%c0_i32_20] : memref<2x!tpu.dma_semaphore, #tpu.memory_space<semaphore_mem>> -> memref<1x!tpu.dma_semaphore, #tpu.memory_space<semaphore_mem>>
    %48 = tpu.memref_squeeze %47 : memref<1x!tpu.dma_semaphore, #tpu.memory_space<semaphore_mem>> -> memref<!tpu.dma_semaphore, #tpu.memory_space<semaphore_mem>>
    tpu.enqueue_dma source(%44 : memref<1x128xf32, #tpu.memory_space<any>>) target(%46 : memref<1x128xf32, #tpu.memory_space<vmem>>) target_semaphore(%48 : memref<!tpu.dma_semaphore, #tpu.memory_space<semaphore_mem>>)
    %c0_i32_24 = arith.constant 0 : i32
    %c0_i32_25 = arith.constant 0 : i32
    %c0_i32_26 = arith.constant 0 : i32
    %49 = tpu.memref_slice %arg3[%17, %c0_i32_26] : memref<64x128xf32, #tpu.memory_space<any>> -> memref<1x128xf32, #tpu.memory_space<any>>
    %c4_i32_27 = arith.constant 4 : i32
    %c0_i32_28 = arith.constant 0 : i32
    %50 = tpu.memref_slice %arg5[%c0_i32_24, %c4_i32_27, %c0_i32_28] : memref<1x9x128xf32, #tpu.memory_space<vmem>> -> memref<1x1x128xf32, #tpu.memory_space<vmem>>
    %51 = tpu.memref_squeeze %50 : memref<1x1x128xf32, #tpu.memory_space<vmem>> -> memref<1x128xf32, #tpu.memory_space<vmem>>
    %52 = tpu.memref_slice %arg6[%c0_i32_25] : memref<2x!tpu.dma_semaphore, #tpu.memory_space<semaphore_mem>> -> memref<1x!tpu.dma_semaphore, #tpu.memory_space<semaphore_mem>>
    %53 = tpu.memref_squeeze %52 : memref<1x!tpu.dma_semaphore, #tpu.memory_space<semaphore_mem>> -> memref<!tpu.dma_semaphore, #tpu.memory_space<semaphore_mem>>
    tpu.enqueue_dma source(%49 : memref<1x128xf32, #tpu.memory_space<any>>) target(%51 : memref<1x128xf32, #tpu.memory_space<vmem>>) target_semaphore(%53 : memref<!tpu.dma_semaphore, #tpu.memory_space<semaphore_mem>>)
    %c0_i32_29 = arith.constant 0 : i32
    %c0_i32_30 = arith.constant 0 : i32
    %c0_i32_31 = arith.constant 0 : i32
    %54 = tpu.memref_slice %arg3[%21, %c0_i32_31] : memref<64x128xf32, #tpu.memory_space<any>> -> memref<1x128xf32, #tpu.memory_space<any>>
    %c5_i32_32 = arith.constant 5 : i32
    %c0_i32_33 = arith.constant 0 : i32
    %55 = tpu.memref_slice %arg5[%c0_i32_29, %c5_i32_32, %c0_i32_33] : memref<1x9x128xf32, #tpu.memory_space<vmem>> -> memref<1x1x128xf32, #tpu.memory_space<vmem>>
    %56 = tpu.memref_squeeze %55 : memref<1x1x128xf32, #tpu.memory_space<vmem>> -> memref<1x128xf32, #tpu.memory_space<vmem>>
    %57 = tpu.memref_slice %arg6[%c0_i32_30] : memref<2x!tpu.dma_semaphore, #tpu.memory_space<semaphore_mem>> -> memref<1x!tpu.dma_semaphore, #tpu.memory_space<semaphore_mem>>
    %58 = tpu.memref_squeeze %57 : memref<1x!tpu.dma_semaphore, #tpu.memory_space<semaphore_mem>> -> memref<!tpu.dma_semaphore, #tpu.memory_space<semaphore_mem>>
    tpu.enqueue_dma source(%54 : memref<1x128xf32, #tpu.memory_space<any>>) target(%56 : memref<1x128xf32, #tpu.memory_space<vmem>>) target_semaphore(%58 : memref<!tpu.dma_semaphore, #tpu.memory_space<semaphore_mem>>)
    %c0_i32_34 = arith.constant 0 : i32
    %c0_i32_35 = arith.constant 0 : i32
    %c0_i32_36 = arith.constant 0 : i32
    %59 = tpu.memref_slice %arg3[%25, %c0_i32_36] : memref<64x128xf32, #tpu.memory_space<any>> -> memref<1x128xf32, #tpu.memory_space<any>>
    %c6_i32_37 = arith.constant 6 : i32
    %c0_i32_38 = arith.constant 0 : i32
    %60 = tpu.memref_slice %arg5[%c0_i32_34, %c6_i32_37, %c0_i32_38] : memref<1x9x128xf32, #tpu.memory_space<vmem>> -> memref<1x1x128xf32, #tpu.memory_space<vmem>>
    %61 = tpu.memref_squeeze %60 : memref<1x1x128xf32, #tpu.memory_space<vmem>> -> memref<1x128xf32, #tpu.memory_space<vmem>>
    %62 = tpu.memref_slice %arg6[%c0_i32_35] : memref<2x!tpu.dma_semaphore, #tpu.memory_space<semaphore_mem>> -> memref<1x!tpu.dma_semaphore, #tpu.memory_space<semaphore_mem>>
    %63 = tpu.memref_squeeze %62 : memref<1x!tpu.dma_semaphore, #tpu.memory_space<semaphore_mem>> -> memref<!tpu.dma_semaphore, #tpu.memory_space<semaphore_mem>>
    tpu.enqueue_dma source(%59 : memref<1x128xf32, #tpu.memory_space<any>>) target(%61 : memref<1x128xf32, #tpu.memory_space<vmem>>) target_semaphore(%63 : memref<!tpu.dma_semaphore, #tpu.memory_space<semaphore_mem>>)
    %c0_i32_39 = arith.constant 0 : i32
    %c0_i32_40 = arith.constant 0 : i32
    %c0_i32_41 = arith.constant 0 : i32
    %64 = tpu.memref_slice %arg3[%29, %c0_i32_41] : memref<64x128xf32, #tpu.memory_space<any>> -> memref<1x128xf32, #tpu.memory_space<any>>
    %c7_i32_42 = arith.constant 7 : i32
    %c0_i32_43 = arith.constant 0 : i32
    %65 = tpu.memref_slice %arg5[%c0_i32_39, %c7_i32_42, %c0_i32_43] : memref<1x9x128xf32, #tpu.memory_space<vmem>> -> memref<1x1x128xf32, #tpu.memory_space<vmem>>
    %66 = tpu.memref_squeeze %65 : memref<1x1x128xf32, #tpu.memory_space<vmem>> -> memref<1x128xf32, #tpu.memory_space<vmem>>
    %67 = tpu.memref_slice %arg6[%c0_i32_40] : memref<2x!tpu.dma_semaphore, #tpu.memory_space<semaphore_mem>> -> memref<1x!tpu.dma_semaphore, #tpu.memory_space<semaphore_mem>>
    %68 = tpu.memref_squeeze %67 : memref<1x!tpu.dma_semaphore, #tpu.memory_space<semaphore_mem>> -> memref<!tpu.dma_semaphore, #tpu.memory_space<semaphore_mem>>
    tpu.enqueue_dma source(%64 : memref<1x128xf32, #tpu.memory_space<any>>) target(%66 : memref<1x128xf32, #tpu.memory_space<vmem>>) target_semaphore(%68 : memref<!tpu.dma_semaphore, #tpu.memory_space<semaphore_mem>>)
    %c0_i32_44 = arith.constant 0 : i32
    %c0_i32_45 = arith.constant 0 : i32
    %c0_i32_46 = arith.constant 0 : i32
    %69 = tpu.memref_slice %arg3[%33, %c0_i32_46] : memref<64x128xf32, #tpu.memory_space<any>> -> memref<1x128xf32, #tpu.memory_space<any>>
    %c8_i32_47 = arith.constant 8 : i32
    %c0_i32_48 = arith.constant 0 : i32
    %70 = tpu.memref_slice %arg5[%c0_i32_44, %c8_i32_47, %c0_i32_48] : memref<1x9x128xf32, #tpu.memory_space<vmem>> -> memref<1x1x128xf32, #tpu.memory_space<vmem>>
    %71 = tpu.memref_squeeze %70 : memref<1x1x128xf32, #tpu.memory_space<vmem>> -> memref<1x128xf32, #tpu.memory_space<vmem>>
    %72 = tpu.memref_slice %arg6[%c0_i32_45] : memref<2x!tpu.dma_semaphore, #tpu.memory_space<semaphore_mem>> -> memref<1x!tpu.dma_semaphore, #tpu.memory_space<semaphore_mem>>
    %73 = tpu.memref_squeeze %72 : memref<1x!tpu.dma_semaphore, #tpu.memory_space<semaphore_mem>> -> memref<!tpu.dma_semaphore, #tpu.memory_space<semaphore_mem>>
    tpu.enqueue_dma source(%69 : memref<1x128xf32, #tpu.memory_space<any>>) target(%71 : memref<1x128xf32, #tpu.memory_space<vmem>>) target_semaphore(%73 : memref<!tpu.dma_semaphore, #tpu.memory_space<semaphore_mem>>)
    %c0_i32_49 = arith.constant 0 : i32
    %74 = arith.addi %0, %c0_i32_49 : i32
    %75 = arith.index_cast %74 : i32 to index
    %76 = memref.load %arg2[%75] : memref<2xi32, #tpu.memory_space<smem>>
    %77 = arith.index_cast %76 : i32 to index
    %c0 = arith.constant 0 : index
    %78 = vector.load %arg4[%77, %c0] : memref<16x128xf32, #tpu.memory_space<vmem>>, vector<1x128xf32>
    %c0_50 = arith.constant 0 : index
    %c1 = arith.constant 1 : index
    %c0_51 = arith.constant 0 : index
    %79 = vector.load %arg5[%c0_50, %c1, %c0_51] : memref<1x9x128xf32, #tpu.memory_space<vmem>>, vector<1x1x128xf32>
    %80 = vector.shape_cast %79 : vector<1x1x128xf32> to vector<1x128xf32>
    %81 = vector.shape_cast %78 : vector<1x128xf32> to vector<1x1x128xf32>
    tpu.vector_store %arg5[%c0_50, %c1, %c0_51], %81 {strides = array<i32>} : memref<1x9x128xf32, #tpu.memory_space<vmem>>, vector<1x1x128xf32>,
    %c0_i32_52 = arith.constant 0 : i32
    %c0_i32_53 = arith.constant 0 : i32
    %c0_i32_54 = arith.constant 0 : i32
    %82 = tpu.memref_slice %arg3[%5, %c0_i32_54] : memref<64x128xf32, #tpu.memory_space<any>> -> memref<1x128xf32, #tpu.memory_space<any>>
    %c0_i32_55 = arith.constant 0 : i32
    %c0_i32_56 = arith.constant 0 : i32
    %83 = tpu.memref_slice %arg5[%c0_i32_52, %c0_i32_55, %c0_i32_56] : memref<1x9x128xf32, #tpu.memory_space<vmem>> -> memref<1x1x128xf32, #tpu.memory_space<vmem>>
    %84 = tpu.memref_squeeze %83 : memref<1x1x128xf32, #tpu.memory_space<vmem>> -> memref<1x128xf32, #tpu.memory_space<vmem>>
    %85 = tpu.memref_slice %arg6[%c0_i32_53] : memref<2x!tpu.dma_semaphore, #tpu.memory_space<semaphore_mem>> -> memref<1x!tpu.dma_semaphore, #tpu.memory_space<semaphore_mem>>
    %86 = tpu.memref_squeeze %85 : memref<1x!tpu.dma_semaphore, #tpu.memory_space<semaphore_mem>> -> memref<!tpu.dma_semaphore, #tpu.memory_space<semaphore_mem>>
    tpu.wait_dma2 semaphore(%86 : memref<!tpu.dma_semaphore, #tpu.memory_space<semaphore_mem>>) src(%82 : memref<1x128xf32, #tpu.memory_space<any>>) dst(%84 : memref<1x128xf32, #tpu.memory_space<vmem>>)
    %c0_i32_57 = arith.constant 0 : i32
    %c0_i32_58 = arith.constant 0 : i32
    %c0_i32_59 = arith.constant 0 : i32
    %87 = tpu.memref_slice %arg3[%9, %c0_i32_59] : memref<64x128xf32, #tpu.memory_space<any>> -> memref<1x128xf32, #tpu.memory_space<any>>
    %c2_i32_60 = arith.constant 2 : i32
    %c0_i32_61 = arith.constant 0 : i32
    %88 = tpu.memref_slice %arg5[%c0_i32_57, %c2_i32_60, %c0_i32_61] : memref<1x9x128xf32, #tpu.memory_space<vmem>> -> memref<1x1x128xf32, #tpu.memory_space<vmem>>
    %89 = tpu.memref_squeeze %88 : memref<1x1x128xf32, #tpu.memory_space<vmem>> -> memref<1x128xf32, #tpu.memory_space<vmem>>
    %90 = tpu.memref_slice %arg6[%c0_i32_58] : memref<2x!tpu.dma_semaphore, #tpu.memory_space<semaphore_mem>> -> memref<1x!tpu.dma_semaphore, #tpu.memory_space<semaphore_mem>>
    %91 = tpu.memref_squeeze %90 : memref<1x!tpu.dma_semaphore, #tpu.memory_space<semaphore_mem>> -> memref<!tpu.dma_semaphore, #tpu.memory_space<semaphore_mem>>
    tpu.wait_dma2 semaphore(%91 : memref<!tpu.dma_semaphore, #tpu.memory_space<semaphore_mem>>) src(%87 : memref<1x128xf32, #tpu.memory_space<any>>) dst(%89 : memref<1x128xf32, #tpu.memory_space<vmem>>)
    %c0_i32_62 = arith.constant 0 : i32
    %c0_i32_63 = arith.constant 0 : i32
    %c0_i32_64 = arith.constant 0 : i32
    %92 = tpu.memref_slice %arg3[%13, %c0_i32_64] : memref<64x128xf32, #tpu.memory_space<any>> -> memref<1x128xf32, #tpu.memory_space<any>>
    %c3_i32_65 = arith.constant 3 : i32
    %c0_i32_66 = arith.constant 0 : i32
    %93 = tpu.memref_slice %arg5[%c0_i32_62, %c3_i32_65, %c0_i32_66] : memref<1x9x128xf32, #tpu.memory_space<vmem>> -> memref<1x1x128xf32, #tpu.memory_space<vmem>>
    %94 = tpu.memref_squeeze %93 : memref<1x1x128xf32, #tpu.memory_space<vmem>> -> memref<1x128xf32, #tpu.memory_space<vmem>>
    %95 = tpu.memref_slice %arg6[%c0_i32_63] : memref<2x!tpu.dma_semaphore, #tpu.memory_space<semaphore_mem>> -> memref<1x!tpu.dma_semaphore, #tpu.memory_space<semaphore_mem>>
    %96 = tpu.memref_squeeze %95 : memref<1x!tpu.dma_semaphore, #tpu.memory_space<semaphore_mem>> -> memref<!tpu.dma_semaphore, #tpu.memory_space<semaphore_mem>>
    tpu.wait_dma2 semaphore(%96 : memref<!tpu.dma_semaphore, #tpu.memory_space<semaphore_mem>>) src(%92 : memref<1x128xf32, #tpu.memory_space<any>>) dst(%94 : memref<1x128xf32, #tpu.memory_space<vmem>>)
    %c0_i32_67 = arith.constant 0 : i32
    %c0_i32_68 = arith.constant 0 : i32
    %c0_i32_69 = arith.constant 0 : i32
    %97 = tpu.memref_slice %arg3[%17, %c0_i32_69] : memref<64x128xf32, #tpu.memory_space<any>> -> memref<1x128xf32, #tpu.memory_space<any>>
    %c4_i32_70 = arith.constant 4 : i32
    %c0_i32_71 = arith.constant 0 : i32
    %98 = tpu.memref_slice %arg5[%c0_i32_67, %c4_i32_70, %c0_i32_71] : memref<1x9x128xf32, #tpu.memory_space<vmem>> -> memref<1x1x128xf32, #tpu.memory_space<vmem>>
    %99 = tpu.memref_squeeze %98 : memref<1x1x128xf32, #tpu.memory_space<vmem>> -> memref<1x128xf32, #tpu.memory_space<vmem>>
    %100 = tpu.memref_slice %arg6[%c0_i32_68] : memref<2x!tpu.dma_semaphore, #tpu.memory_space<semaphore_mem>> -> memref<1x!tpu.dma_semaphore, #tpu.memory_space<semaphore_mem>>
    %101 = tpu.memref_squeeze %100 : memref<1x!tpu.dma_semaphore, #tpu.memory_space<semaphore_mem>> -> memref<!tpu.dma_semaphore, #tpu.memory_space<semaphore_mem>>
    tpu.wait_dma2 semaphore(%101 : memref<!tpu.dma_semaphore, #tpu.memory_space<semaphore_mem>>) src(%97 : memref<1x128xf32, #tpu.memory_space<any>>) dst(%99 : memref<1x128xf32, #tpu.memory_space<vmem>>)
    %c0_i32_72 = arith.constant 0 : i32
    %c0_i32_73 = arith.constant 0 : i32
    %c0_i32_74 = arith.constant 0 : i32
    %102 = tpu.memref_slice %arg3[%21, %c0_i32_74] : memref<64x128xf32, #tpu.memory_space<any>> -> memref<1x128xf32, #tpu.memory_space<any>>
    %c5_i32_75 = arith.constant 5 : i32
    %c0_i32_76 = arith.constant 0 : i32
    %103 = tpu.memref_slice %arg5[%c0_i32_72, %c5_i32_75, %c0_i32_76] : memref<1x9x128xf32, #tpu.memory_space<vmem>> -> memref<1x1x128xf32, #tpu.memory_space<vmem>>
    %104 = tpu.memref_squeeze %103 : memref<1x1x128xf32, #tpu.memory_space<vmem>> -> memref<1x128xf32, #tpu.memory_space<vmem>>
    %105 = tpu.memref_slice %arg6[%c0_i32_73] : memref<2x!tpu.dma_semaphore, #tpu.memory_space<semaphore_mem>> -> memref<1x!tpu.dma_semaphore, #tpu.memory_space<semaphore_mem>>
    %106 = tpu.memref_squeeze %105 : memref<1x!tpu.dma_semaphore, #tpu.memory_space<semaphore_mem>> -> memref<!tpu.dma_semaphore, #tpu.memory_space<semaphore_mem>>
    tpu.wait_dma2 semaphore(%106 : memref<!tpu.dma_semaphore, #tpu.memory_space<semaphore_mem>>) src(%102 : memref<1x128xf32, #tpu.memory_space<any>>) dst(%104 : memref<1x128xf32, #tpu.memory_space<vmem>>)
    %c0_i32_77 = arith.constant 0 : i32
    %c0_i32_78 = arith.constant 0 : i32
    %c0_i32_79 = arith.constant 0 : i32
    %107 = tpu.memref_slice %arg3[%25, %c0_i32_79] : memref<64x128xf32, #tpu.memory_space<any>> -> memref<1x128xf32, #tpu.memory_space<any>>
    %c6_i32_80 = arith.constant 6 : i32
    %c0_i32_81 = arith.constant 0 : i32
    %108 = tpu.memref_slice %arg5[%c0_i32_77, %c6_i32_80, %c0_i32_81] : memref<1x9x128xf32, #tpu.memory_space<vmem>> -> memref<1x1x128xf32, #tpu.memory_space<vmem>>
    %109 = tpu.memref_squeeze %108 : memref<1x1x128xf32, #tpu.memory_space<vmem>> -> memref<1x128xf32, #tpu.memory_space<vmem>>
    %110 = tpu.memref_slice %arg6[%c0_i32_78] : memref<2x!tpu.dma_semaphore, #tpu.memory_space<semaphore_mem>> -> memref<1x!tpu.dma_semaphore, #tpu.memory_space<semaphore_mem>>
    %111 = tpu.memref_squeeze %110 : memref<1x!tpu.dma_semaphore, #tpu.memory_space<semaphore_mem>> -> memref<!tpu.dma_semaphore, #tpu.memory_space<semaphore_mem>>
    tpu.wait_dma2 semaphore(%111 : memref<!tpu.dma_semaphore, #tpu.memory_space<semaphore_mem>>) src(%107 : memref<1x128xf32, #tpu.memory_space<any>>) dst(%109 : memref<1x128xf32, #tpu.memory_space<vmem>>)
    %c0_i32_82 = arith.constant 0 : i32
    %c0_i32_83 = arith.constant 0 : i32
    %c0_i32_84 = arith.constant 0 : i32
    %112 = tpu.memref_slice %arg3[%29, %c0_i32_84] : memref<64x128xf32, #tpu.memory_space<any>> -> memref<1x128xf32, #tpu.memory_space<any>>
    %c7_i32_85 = arith.constant 7 : i32
    %c0_i32_86 = arith.constant 0 : i32
    %113 = tpu.memref_slice %arg5[%c0_i32_82, %c7_i32_85, %c0_i32_86] : memref<1x9x128xf32, #tpu.memory_space<vmem>> -> memref<1x1x128xf32, #tpu.memory_space<vmem>>
    %114 = tpu.memref_squeeze %113 : memref<1x1x128xf32, #tpu.memory_space<vmem>> -> memref<1x128xf32, #tpu.memory_space<vmem>>
    %115 = tpu.memref_slice %arg6[%c0_i32_83] : memref<2x!tpu.dma_semaphore, #tpu.memory_space<semaphore_mem>> -> memref<1x!tpu.dma_semaphore, #tpu.memory_space<semaphore_mem>>
    %116 = tpu.memref_squeeze %115 : memref<1x!tpu.dma_semaphore, #tpu.memory_space<semaphore_mem>> -> memref<!tpu.dma_semaphore, #tpu.memory_space<semaphore_mem>>
    tpu.wait_dma2 semaphore(%116 : memref<!tpu.dma_semaphore, #tpu.memory_space<semaphore_mem>>) src(%112 : memref<1x128xf32, #tpu.memory_space<any>>) dst(%114 : memref<1x128xf32, #tpu.memory_space<vmem>>)
    %c0_i32_87 = arith.constant 0 : i32
    %c0_i32_88 = arith.constant 0 : i32
    %c0_i32_89 = arith.constant 0 : i32
    %117 = tpu.memref_slice %arg3[%33, %c0_i32_89] : memref<64x128xf32, #tpu.memory_space<any>> -> memref<1x128xf32, #tpu.memory_space<any>>
    %c8_i32_90 = arith.constant 8 : i32
    %c0_i32_91 = arith.constant 0 : i32
    %118 = tpu.memref_slice %arg5[%c0_i32_87, %c8_i32_90, %c0_i32_91] : memref<1x9x128xf32, #tpu.memory_space<vmem>> -> memref<1x1x128xf32, #tpu.memory_space<vmem>>
    %119 = tpu.memref_squeeze %118 : memref<1x1x128xf32, #tpu.memory_space<vmem>> -> memref<1x128xf32, #tpu.memory_space<vmem>>
    %120 = tpu.memref_slice %arg6[%c0_i32_88] : memref<2x!tpu.dma_semaphore, #tpu.memory_space<semaphore_mem>> -> memref<1x!tpu.dma_semaphore, #tpu.memory_space<semaphore_mem>>
    %121 = tpu.memref_squeeze %120 : memref<1x!tpu.dma_semaphore, #tpu.memory_space<semaphore_mem>> -> memref<!tpu.dma_semaphore, #tpu.memory_space<semaphore_mem>>
    tpu.wait_dma2 semaphore(%121 : memref<!tpu.dma_semaphore, #tpu.memory_space<semaphore_mem>>) src(%117 : memref<1x128xf32, #tpu.memory_space<any>>) dst(%119 : memref<1x128xf32, #tpu.memory_space<vmem>>)
    return
  }
  func.func @transform_1(%arg0: i32, %arg1: memref<16xi32, #tpu.memory_space<smem>>, %arg2: memref<2xi32, #tpu.memory_space<smem>>) -> (i32, i32) {
    %c0_i32 = arith.constant 0 : i32
    %c0_i32_0 = arith.constant 0 : i32
    %c0_i32_1 = arith.constant 0 : i32
    return %c0_i32, %c0_i32_0 : i32, i32
  }
  func.func @transform_2(%arg0: i32, %arg1: memref<16xi32, #tpu.memory_space<smem>>, %arg2: memref<2xi32, #tpu.memory_space<smem>>) -> (i32, i32, i32) {
    %c0_i32 = arith.constant 0 : i32
    %c0_i32_0 = arith.constant 0 : i32
    %c0_i32_1 = arith.constant 0 : i32
    return %arg0, %c0_i32, %c0_i32_0 : i32, i32, i32
  }
}

</mosaic_0001>

<llo_original>
// kernel: tpu_custom_call.1
$region0: #{tpu_custom_call.1}
  #allocation0 [shape = 'u32[]', space=smem, size = 0x4, offset = 0x4, fixed_abs, tag = 'smem constant byte address 0x4 - core index']
  #allocation1 [shape = 'u32[72,128]{1,0:T(1,128)}', space=vmem, size = 0x9000, scoped, tag = 'internal scratch']
  #allocation2 [shape = 's32[2]{0}', space=sflag, size = 0x8, scoped, tag = 'scratch operand']
  #allocation3 [shape = 's32[1]{0}', space=sflag, size = 0x4, scoped, tag = 'scoped memory for tpu_custom_call.1']
  #allocation4 [shape = 'u8[512]{0}', space=smem, size = 0x200, scoped, tag = 'prefetched SMEM operand 0']
  #allocation5 [shape = 'u8[512]{0}', space=smem, size = 0x200, scoped, tag = 'prefetched SMEM operand 1']
  #allocation8 [shape = 's32[]', space=sflag, size = 0x4, offset = 0, fixed_abs, tag = 'sflag constant byte address 0x0 - dummy sync flag']
  #allocation9 [shape = 's32[]', space=sflag, size = 0x4, offset = 0, fixed_abs, tag = 'sflag constant byte address 0x0 - dummy sync flag']
  #allocation10 [shape = 'u32[]', space=smem, size = 0x4, offset = 0x44, fixed_abs, tag = 'smem constant byte address 0x44 - assertion arg 0']
  #allocation11 [shape = 'u32[]', space=smem, size = 0x4, offset = 0x48, fixed_abs, tag = 'smem constant byte address 0x48 - assertion arg 1']
  #allocation12 [shape = 's32[]', space=sflag, size = 0x4, offset = 0, fixed_abs, tag = 'sflag constant byte address 0x0 - dummy sync flag']
  #allocation13 [shape = 's32[]', space=sflag, size = 0x4, offset = 0, fixed_abs, tag = 'sflag constant byte address 0x0 - dummy sync flag']
  #allocation14 [shape = 's32[]', space=sflag, size = 0x4, offset = 0, fixed_abs, tag = 'sflag constant byte address 0x0 - dummy sync flag']
  #allocation15 [shape = 's32[]', space=sflag, size = 0x4, offset = 0, fixed_abs, tag = 'sflag constant byte address 0x0 - dummy sync flag']
  #allocation16 [shape = 's32[]', space=sflag, size = 0x4, offset = 0, fixed_abs, tag = 'sflag constant byte address 0x0 - dummy sync flag']
  #allocation17 [shape = 's32[]', space=sflag, size = 0x4, offset = 0, fixed_abs, tag = 'sflag constant byte address 0x0 - dummy sync flag']
  #allocation18 [shape = 's32[]', space=sflag, size = 0x4, offset = 0, fixed_abs, tag = 'sflag constant byte address 0x0 - dummy sync flag']
  #allocation19 [shape = 's32[]', space=sflag, size = 0x4, offset = 0, fixed_abs, tag = 'sflag constant byte address 0x0 - dummy sync flag']
  #allocation20 [shape = 's32[]', space=sflag, size = 0x4, offset = 0, fixed_abs, tag = 'sflag constant byte address 0x0 - dummy sync flag']
  #allocation21 [shape = 's32[]', space=sflag, size = 0x4, offset = 0, fixed_abs, tag = 'sflag constant byte address 0x0 - dummy sync flag']
  #allocation22 [shape = 's32[]', space=sflag, size = 0x4, offset = 0, fixed_abs, tag = 'sflag constant byte address 0x0 - dummy sync flag']
  #allocation23 [shape = 's32[]', space=sflag, size = 0x4, offset = 0, fixed_abs, tag = 'sflag constant byte address 0x0 - dummy sync flag']
  #allocation24 [shape = 's32[]', space=sflag, size = 0x4, offset = 0, fixed_abs, tag = 'sflag constant byte address 0x0 - dummy sync flag']
  #allocation25 [shape = 's32[]', space=sflag, size = 0x4, offset = 0, fixed_abs, tag = 'sflag constant byte address 0x0 - dummy sync flag']
  %s0 = inlined_call_operand.hbm [shape: s32[16], index: 0, kind: input, shape index: {}]
  %s1 = inlined_call_operand.hbm [shape: s32[2], index: 1, kind: input, shape index: {}]
  %s2 = inlined_call_operand.hbm [shape: f32[64,128], index: 2, kind: input, shape index: {}]
  %s3 = inlined_call_operand.hbm [shape: f32[16,128], index: 3, kind: input, shape index: {}]
  %s4 = inlined_call_operand.vmem [shape: f32[2,9,128], index: 4, kind: output, shape index: {}]
  %s5 = sld [smem:[#allocation0]]
  $region73: #{tpu_custom_call.1} parent=0
    _
  %s7 = ssub.s32 1, %s5
  %s8 = scalar_select 0, %s7, %s5
  %s10 = sshll.u32 %s0, 4
  %s11 = int_to_ptr.hbm [resolvable:$true] %s10
  %13 = dma.hbm_to_smem %s11, 16, [#allocation4], [#allocation3]
  %s15 = sshll.u32 %s1, 4
  %s16 = int_to_ptr.hbm [resolvable:$true] %s15
  %18 = dma.hbm_to_smem %s16, 16, [#allocation5], [#allocation3]
  %20 = dma.done [#allocation3], 32
  %21 = sfence
  $region1: #{tpu_custom_call.1} parent=0
    #allocation6 [shape = 'u8[8192]{0}', space=vmem, size = 0x2000, scoped, tag = 'input window, operand 3, single buffered']
    #allocation7 [shape = 's32[2]{0}', space=sflag, size = 0x8, scoped, tag = 'scoped memory for tpu_custom_call.1']
    %22 = vsyncpa [#allocation7], 0
    loop: start=0, step=1, limit=4
    $region2: #{tpu_custom_call.1} parent=1 // loop_pre_header
      _
    $region3: #{tpu_custom_call.1} parent=1 // loop_header
      %s24 = sphi 0, %s28
      %p25 = scmp.ge.s32.totalorder %s24, 4
      %s32 = sphi 0, %s32
      %s34 = sphi 0, %s32
      %s35 = sphi 0, %s34
      %s49 = sphi 0, %s35
      %s55 = sphi 0, %s57
      %s58 = sphi 0, %s55
      %s59 = sphi 0, %s58
      %s75 = sphi 0, %s59
    $region4: #{tpu_custom_call.1} parent=1 // loop_header_branch
      %27 = sbr.rel (%p25) target = $region8
    $region5: #{tpu_custom_call.1} parent=1 // loop_body
      %s29 = ssub.s32 %s24, 1
      %s30 = ssub.s32 %s24, 2
      %s31 = sadd.s32 %s24, 1
      %s33 = sadd.s32 %s32, 1
      %p36 = scmp.eq.s32.totalorder %s24, 1
      %p37 = scmp.ne.s32.totalorder %s32, %s34
      %p38 = scmp.eq.s32.totalorder %s24, 0
      %p39 = por %p37, %p38
      %p40 = scmp.ne.s32.totalorder %s32, %s34
      %p41 = scmp.eq.s32.totalorder %s29, 1
      %p42 = por %p40, %p41
      %p43 = scmp.ne.s32.totalorder %s34, %s35
      %p44 = scmp.eq.s32.totalorder %s29, 0
      %p45 = por %p43, %p44
      %p46 = scmp.ne.s32.totalorder %s34, %s35
      %p47 = scmp.eq.s32.totalorder %s30, 1
      %p48 = por %p46, %p47
      %p50 = scmp.ne.s32.totalorder %s35, %s49
      %p51 = scmp.eq.s32.totalorder %s30, 0
      %p52 = por %p50, %p51
      %s53 = ssub.s32 %s24, %s31
      %p54 = scmp.eq.s32.totalorder %s53, 0
      %s56 = sadd.s32 %s55, 1
      %s57 = scalar_select %p54, %s55, %s56
      %p60 = pneg %p54
      %p61 = scmp.eq.s32.totalorder %s24, 1
      %p62 = por %p60, %p61
      %p63 = scmp.ne.s32.totalorder %s55, %s58
      %p64 = scmp.eq.s32.totalorder %s24, 0
      %p65 = por %p63, %p64
      %p66 = scmp.ne.s32.totalorder %s55, %s58
      %p67 = scmp.eq.s32.totalorder %s29, 1
      %p68 = por %p66, %p67
      %p69 = scmp.ne.s32.totalorder %s58, %s59
      %p70 = scmp.eq.s32.totalorder %s29, 0
      %p71 = por %p69, %p70
      %p72 = scmp.ne.s32.totalorder %s58, %s59
      %p73 = scmp.eq.s32.totalorder %s30, 1
      %p74 = por %p72, %p73
      %p76 = scmp.ne.s32.totalorder %s59, %s75
      %p77 = scmp.eq.s32.totalorder %s30, 0
      %p78 = por %p76, %p77
      %p79 = scmp.le.s32.totalorder 1, %s24
      %p80 = scmp.lt.s32.totalorder %s24, 3
      %p81 = pnand %p79, %p80
      %p82 = pneg %p81
      // Predicated region
      $region9: #{tpu_custom_call.1} parent=5 // pred_check
        _
      $region10: #{tpu_custom_call.1} parent=5 // pred_check_branch
        %84 = sbr.rel (%p81) target = $region12
      $region11: #{tpu_custom_call.1} parent=5 // pred_region
        %s85 = ssub.s32 %s24, 1
        // Predicated region
        $region13: #{tpu_custom_call.1} parent=11 // pred_check
          %p86 = pneg %p45
        $region14: #{tpu_custom_call.1} parent=11 // pred_check_branch
          %88 = sbr.rel (%p86) target = $region16
        $region15: #{tpu_custom_call.1} parent=11 // pred_region
          %90 = vsyncadd [#allocation7], 0
          %s91 = sshll.u32 %s3, 4
          %s92 = int_to_ptr.hbm [resolvable:$true] %s91
          %s93 = sshll.u32 [#allocation6], 4
          %s94 = int_to_ptr.vmem [resolvable:$true] %s93
          %99 = dma.hbm_to_vmem [thread:$0]  %s92, 256, %s94, [#allocation7], 128, 128, 8
        $region16: #{tpu_custom_call.1} parent=11 // pred_fallthru
          _
      $region12: #{tpu_custom_call.1} parent=5 // pred_fallthru
        _
      %p100 = scmp.lt.s32.totalorder %s24, 2
      // Predicated region
      $region17: #{tpu_custom_call.1} parent=5 // pred_check
        %p101 = pneg %p100
      $region18: #{tpu_custom_call.1} parent=5 // pred_check_branch
        %103 = sbr.rel (%p101) target = $region20
      $region19: #{tpu_custom_call.1} parent=5 // pred_region
        _
      $region20: #{tpu_custom_call.1} parent=5 // pred_fallthru
        _
      %p104 = scmp.le.s32.totalorder 1, %s24
      %p105 = scmp.lt.s32.totalorder %s24, 3
      %p106 = pnand %p104, %p105
      %p107 = pneg %p106
      // Predicated region
      $region21: #{tpu_custom_call.1} parent=5 // pred_check
        _
      $region22: #{tpu_custom_call.1} parent=5 // pred_check_branch
        %109 = sbr.rel (%p106) target = $region24
      $region23: #{tpu_custom_call.1} parent=5 // pred_region
        %s110 = ssub.s32 %s24, 1
        // Predicated region
        $region25: #{tpu_custom_call.1} parent=23 // pred_check
          %p111 = pneg %p45
        $region26: #{tpu_custom_call.1} parent=23 // pred_check_branch
          %113 = sbr.rel (%p111) target = $region28
        $region27: #{tpu_custom_call.1} parent=23 // pred_region
          %115 = dma.done [#allocation7], 256
        $region28: #{tpu_custom_call.1} parent=23 // pred_fallthru
          _
        %p116 = pneg %p45
        %p117 = pneg %p42
        %p118 = pneg %p71
        %p119 = pneg %p68
        %p120 = scmp.lt.s32.totalorder %s29, 1
        %s121 = scalar_select %p120, %s29, 1
        %s122 = smul.addr %s121, 2
        %s123 = smul.addr %s122, 8
        %s124 = scalar_lea.vmem %s4, %s123
        %p125 = scmp.lt.s32.totalorder %s29, 1
        %s126 = scalar_select %p125, %s29, 1
        %s127 = smul.addr %s126, 2
        %s128 = smul.addr %s127, 8
        %s129 = scalar_lea.vmem %s4, %s128
        %s130 = smul.u32 %s29, 8
        %s131 = sld [smem:[#allocation4 + %s130]]
        %s132 = sadd.s32 %s130, 1
        %s133 = sld [smem:[#allocation4 + %s132]]
        %s134 = sadd.s32 %s130, 2
        %s135 = sld [smem:[#allocation4 + %s134]]
        %s136 = sadd.s32 %s130, 3
        %s137 = sld [smem:[#allocation4 + %s136]]
        %s138 = sadd.s32 %s130, 4
        %s139 = sld [smem:[#allocation4 + %s138]]
        %s140 = sadd.s32 %s130, 5
        %s141 = sld [smem:[#allocation4 + %s140]]
        %s142 = sadd.s32 %s130, 6
        %s143 = sld [smem:[#allocation4 + %s142]]
        %s144 = sadd.s32 %s130, 7
        %s145 = sld [smem:[#allocation4 + %s144]]
        %s146 = scalar_lea.hbm %s2, %s131
        // Predicated region
        $region29: #{tpu_custom_call.1} parent=23 // pred_check
          _
        $region30: #{tpu_custom_call.1} parent=23 // pred_check_branch
          %148 = sbr.rel target = $region32
        $region31: #{tpu_custom_call.1} parent=23 // pred_region
          %149 = sst [smem:[#allocation10]] [#allocation9]
          %150 = sst [smem:[#allocation11]] [#allocation8]
        $region32: #{tpu_custom_call.1} parent=23 // pred_fallthru
          _
        %152 = shalt.err (0)
        %s154 = sshll.u32 %s146, 4
        %s155 = int_to_ptr.hbm [resolvable:$true] %s154
        %s156 = sshll.u32 %s129, 4
        %s157 = int_to_ptr.vmem [resolvable:$true] %s156
        %159 = dma.hbm_to_vmem [thread:$0]  %s155, 16, %s157, [#allocation2]
        %s160 = scalar_lea.hbm %s2, %s133
        %s161 = scalar_lea.vmem %s129, 2
        // Predicated region
        $region33: #{tpu_custom_call.1} parent=23 // pred_check
          _
        $region34: #{tpu_custom_call.1} parent=23 // pred_check_branch
          %163 = sbr.rel target = $region36
        $region35: #{tpu_custom_call.1} parent=23 // pred_region
          %164 = sst [smem:[#allocation10]] [#allocation13]
          %165 = sst [smem:[#allocation11]] [#allocation12]
        $region36: #{tpu_custom_call.1} parent=23 // pred_fallthru
          _
        %167 = shalt.err (0)
        %s169 = sshll.u32 %s160, 4
        %s170 = int_to_ptr.hbm [resolvable:$true] %s169
        %s171 = sshll.u32 %s161, 4
        %s172 = int_to_ptr.vmem [resolvable:$true] %s171
        %174 = dma.hbm_to_vmem [thread:$0]  %s170, 16, %s172, [#allocation2]
        %s175 = scalar_lea.hbm %s2, %s135
        %s176 = scalar_lea.vmem %s129, 3
        // Predicated region
        $region37: #{tpu_custom_call.1} parent=23 // pred_check
          _
        $region38: #{tpu_custom_call.1} parent=23 // pred_check_branch
          %178 = sbr.rel target = $region40
        $region39: #{tpu_custom_call.1} parent=23 // pred_region
          %179 = sst [smem:[#allocation10]] [#allocation15]
          %180 = sst [smem:[#allocation11]] [#allocation14]
        $region40: #{tpu_custom_call.1} parent=23 // pred_fallthru
          _
        %182 = shalt.err (0)
        %s184 = sshll.u32 %s175, 4
        %s185 = int_to_ptr.hbm [resolvable:$true] %s184
        %s186 = sshll.u32 %s176, 4
        %s187 = int_to_ptr.vmem [resolvable:$true] %s186
        %189 = dma.hbm_to_vmem [thread:$0]  %s185, 16, %s187, [#allocation2]
        %s190 = scalar_lea.hbm %s2, %s137
        %s191 = scalar_lea.vmem %s129, 4
        // Predicated region
        $region41: #{tpu_custom_call.1} parent=23 // pred_check
          _
        $region42: #{tpu_custom_call.1} parent=23 // pred_check_branch
          %193 = sbr.rel target = $region44
        $region43: #{tpu_custom_call.1} parent=23 // pred_region
          %194 = sst [smem:[#allocation10]] [#allocation17]
          %195 = sst [smem:[#allocation11]] [#allocation16]
        $region44: #{tpu_custom_call.1} parent=23 // pred_fallthru
          _
        %197 = shalt.err (0)
        %s199 = sshll.u32 %s190, 4
        %s200 = int_to_ptr.hbm [resolvable:$true] %s199
        %s201 = sshll.u32 %s191, 4
        %s202 = int_to_ptr.vmem [resolvable:$true] %s201
        %204 = dma.hbm_to_vmem [thread:$0]  %s200, 16, %s202, [#allocation2]
        %s205 = scalar_lea.hbm %s2, %s139
        %s206 = scalar_lea.vmem %s129, 5
        // Predicated region
        $region45: #{tpu_custom_call.1} parent=23 // pred_check
          _
        $region46: #{tpu_custom_call.1} parent=23 // pred_check_branch
          %208 = sbr.rel target = $region48
        $region47: #{tpu_custom_call.1} parent=23 // pred_region
          %209 = sst [smem:[#allocation10]] [#allocation19]
          %210 = sst [smem:[#allocation11]] [#allocation18]
        $region48: #{tpu_custom_call.1} parent=23 // pred_fallthru
          _
        %212 = shalt.err (0)
        %s214 = sshll.u32 %s205, 4
        %s215 = int_to_ptr.hbm [resolvable:$true] %s214
        %s216 = sshll.u32 %s206, 4
        %s217 = int_to_ptr.vmem [resolvable:$true] %s216
        %219 = dma.hbm_to_vmem [thread:$0]  %s215, 16, %s217, [#allocation2]
        %s220 = scalar_lea.hbm %s2, %s141
        %s221 = scalar_lea.vmem %s129, 6
        // Predicated region
        $region49: #{tpu_custom_call.1} parent=23 // pred_check
          _
        $region50: #{tpu_custom_call.1} parent=23 // pred_check_branch
          %223 = sbr.rel target = $region52
        $region51: #{tpu_custom_call.1} parent=23 // pred_region
          %224 = sst [smem:[#allocation10]] [#allocation21]
          %225 = sst [smem:[#allocation11]] [#allocation20]
        $region52: #{tpu_custom_call.1} parent=23 // pred_fallthru
          _
        %227 = shalt.err (0)
        %s229 = sshll.u32 %s220, 4
        %s230 = int_to_ptr.hbm [resolvable:$true] %s229
        %s231 = sshll.u32 %s221, 4
        %s232 = int_to_ptr.vmem [resolvable:$true] %s231
        %234 = dma.hbm_to_vmem [thread:$0]  %s230, 16, %s232, [#allocation2]
        %s235 = scalar_lea.hbm %s2, %s143
        %s236 = scalar_lea.vmem %s129, 7
        // Predicated region
        $region53: #{tpu_custom_call.1} parent=23 // pred_check
          _
        $region54: #{tpu_custom_call.1} parent=23 // pred_check_branch
          %238 = sbr.rel target = $region56
        $region55: #{tpu_custom_call.1} parent=23 // pred_region
          %239 = sst [smem:[#allocation10]] [#allocation23]
          %240 = sst [smem:[#allocation11]] [#allocation22]
        $region56: #{tpu_custom_call.1} parent=23 // pred_fallthru
          _
        %242 = shalt.err (0)
        %s244 = sshll.u32 %s235, 4
        %s245 = int_to_ptr.hbm [resolvable:$true] %s244
        %s246 = sshll.u32 %s236, 4
        %s247 = int_to_ptr.vmem [resolvable:$true] %s246
        %249 = dma.hbm_to_vmem [thread:$0]  %s245, 16, %s247, [#allocation2]
        %s250 = scalar_lea.hbm %s2, %s145
        %s251 = scalar_lea.vmem %s129, 8
        // Predicated region
        $region57: #{tpu_custom_call.1} parent=23 // pred_check
          _
        $region58: #{tpu_custom_call.1} parent=23 // pred_check_branch
          %253 = sbr.rel target = $region60
        $region59: #{tpu_custom_call.1} parent=23 // pred_region
          %254 = sst [smem:[#allocation10]] [#allocation25]
          %255 = sst [smem:[#allocation11]] [#allocation24]
        $region60: #{tpu_custom_call.1} parent=23 // pred_fallthru
          _
        %257 = shalt.err (0)
        %s259 = sshll.u32 %s250, 4
        %s260 = int_to_ptr.hbm [resolvable:$true] %s259
        %s261 = sshll.u32 %s251, 4
        %s262 = int_to_ptr.vmem [resolvable:$true] %s261
        %264 = dma.hbm_to_vmem [thread:$0]  %s260, 16, %s262, [#allocation2]
        %s265 = sld [smem:[#allocation5 + %s29]]
        %s266 = scalar_lea.vmem [#allocation6], %s265
        %v267 = vld [vmem:[%s266] sm:$0x1]
        %268 = vst [vmem:[%s129 + $0x1] sm:$0x1] %v267
        %s269 = smul.u32 1, 1
        %s270 = sshll.u32 %s269, 4
        %271 = dma.done [#allocation2], %s270
        %s272 = sshll.u32 %s269, 4
        %273 = dma.done [#allocation2], %s272
        %s274 = sshll.u32 %s269, 4
        %275 = dma.done [#allocation2], %s274
        %s276 = sshll.u32 %s269, 4
        %277 = dma.done [#allocation2], %s276
        %s278 = sshll.u32 %s269, 4
        %279 = dma.done [#allocation2], %s278
        %s280 = sshll.u32 %s269, 4
        %281 = dma.done [#allocation2], %s280
        %s282 = sshll.u32 %s269, 4
        %283 = dma.done [#allocation2], %s282
        %s284 = sshll.u32 %s269, 4
        %285 = dma.done [#allocation2], %s284
        %p286 = scmp.lt.s32.totalorder %s29, 1
        %s287 = scalar_select %p286, %s29, 1
        %s288 = smul.addr %s287, 2
        %s289 = smul.addr %s288, 8
        %s290 = scalar_lea.vmem %s4, %s289
        // Predicated region
        $region61: #{tpu_custom_call.1} parent=23 // pred_check
          %p291 = pneg %p68
        $region62: #{tpu_custom_call.1} parent=23 // pred_check_branch
          %293 = sbr.rel (%p291) target = $region64
        $region63: #{tpu_custom_call.1} parent=23 // pred_region
          _
        $region64: #{tpu_custom_call.1} parent=23 // pred_fallthru
          _
      $region24: #{tpu_custom_call.1} parent=5 // pred_fallthru
        _
      %p294 = scmp.le.s32.totalorder 2, %s24
      // Predicated region
      $region65: #{tpu_custom_call.1} parent=5 // pred_check
        %p295 = pneg %p294
      $region66: #{tpu_custom_call.1} parent=5 // pred_check_branch
        %297 = sbr.rel (%p295) target = $region68
      $region67: #{tpu_custom_call.1} parent=5 // pred_region
        %s298 = ssub.s32 %s24, 2
        // Predicated region
        $region69: #{tpu_custom_call.1} parent=67 // pred_check
          %p299 = pneg %p74
        $region70: #{tpu_custom_call.1} parent=67 // pred_check_branch
          %301 = sbr.rel (%p299) target = $region72
        $region71: #{tpu_custom_call.1} parent=67 // pred_region
          %p302 = scmp.lt.s32.totalorder %s30, 1
          %s303 = scalar_select %p302, %s30, 1
          %s304 = smul.addr %s303, 2
          %s305 = smul.addr %s304, 8
          %s306 = scalar_lea.vmem %s4, %s305
        $region72: #{tpu_custom_call.1} parent=67 // pred_fallthru
          _
      $region68: #{tpu_custom_call.1} parent=5 // pred_fallthru
        _
    $region6: #{tpu_custom_call.1} parent=1 // loop_footer
      %s28 = sadd.s32 1, %s24
    $region7: #{tpu_custom_call.1} parent=1 // loop_footer_branch
      %23 = sbr.rel target = $region3
    $region8: #{tpu_custom_call.1} parent=1 // loop_exit
      _
    %307 = vsyncpa [#allocation7], 1
    %s308 = scalar_lea.sflag [#allocation7], 1
    %309 = vsyncpa %s308, 1
  %310 = vsyncmov [#allocation2]
  %s311 = vpop.sfrf %310
  %p312 = scmp.eq.s32.totalorder %s311, 0
  %p313 = pneg %p312
  %315 = shalt.err (%p313)
  %s316 = scalar_lea.sflag [#allocation2], 1
  %317 = vsyncmov %s316
  %s318 = vpop.sfrf %317
  %p319 = scmp.eq.s32.totalorder %s318, 0
  %p320 = pneg %p319
  %322 = shalt.err (%p320)

</llo_original>
